<compile_context>
chip_gen: v7x
topology: tpu7x:2x2x1
jax: 0.10.0
libtpu: 0.0.40
codegen_flags: <defaults>
</compile_context>

<pallas_src>
import numpy as np
import jax
import jax.numpy as jnp
from jax.experimental import pallas as pl
from jax.experimental.pallas import tpu as pltpu


def _spatial_softmax_kernel(temp_ref, x_ref, pos_ref, out_ref):
    # temp_ref: (1,) f32 in SMEM; x_ref: (TR, HW); pos_ref: (HW, 3) = [1 | pos_x | pos_y];
    # out_ref: (TR, 2)
    inv_t = 1.0 / temp_ref[0]                      # scalar reciprocal (no full-tile divide)
    x = x_ref[...].astype(jnp.float32) * inv_t

    # numerically-stable softmax statistics over the spatial (lane) axis
    m = jnp.max(x, axis=-1, keepdims=True)         # (TR, 1)
    e = jnp.exp(x - m)                             # (TR, HW) f32

    # One MXU matmul: columns are [sum(e), sum(pos_x*e), sum(pos_y*e)].
    sums = jnp.dot(e, pos_ref[...],
                   preferred_element_type=jnp.float32)        # (TR, 3)
    inv_s = 1.0 / sums[:, 0:1]                     # per-row reciprocal (TR divides)
    out_ref[...] = (sums[:, 1:3] * inv_s).astype(out_ref.dtype)


def make_spatial_softmax_params(height, width, temperature=None):
    """Deterministic parameter / buffer construction mirroring __init__."""
    # np.meshgrid default ('xy') indexing, exactly as in the PyTorch module.
    # (For height != width this reproduces the module's w-major raveling quirk.)
    pos_x, pos_y = np.meshgrid(np.linspace(-1.0, 1.0, height),
                               np.linspace(-1.0, 1.0, width))
    pos_x = jnp.asarray(pos_x.ravel(), jnp.float32)   # (H*W,)
    pos_y = jnp.asarray(pos_y.ravel(), jnp.float32)   # (H*W,)
    # Mirrors `nn.Parameter(torch.ones(1) * temperature) if temperature else 1.0`
    # (note: temperature=0.0 is treated as "unset", same as the PyTorch quirk).
    temp = jnp.asarray([float(temperature)], jnp.float32) if temperature \
        else jnp.asarray([1.0], jnp.float32)
    return pos_x, pos_y, temp


def _tpu_generation_info():
    """Best-effort (physical_vmem_bytes, tensorcores_per_chip)."""
    vmem_bytes = 64 * 1024 * 1024          # conservative default = v7x physical
    num_tc = 1                             # v5e / v6e have a single TensorCore
    try:
        vmem_bytes = int(pltpu.get_tpu_info().vmem_capacity_bytes)
    except Exception:
        pass
    try:
        kind = jax.local_devices()[0].device_kind.lower()
        if "v7" in kind or "7x" in kind:   # v7x: 2 TensorCores share the chip
            num_tc = 2
    except Exception:
        pass
    return vmem_bytes, num_tc


def _pick_block_rows(rows, hw, in_itemsize, vmem_budget_bytes, num_tc,
                     max_block_rows=4096):
    """Row-tile selection.

    Per-row footprint = 2 double-buffered input tiles at the REAL input dtype
    + ~2 full-width f32 intermediates (x, e); the MXU dot output is only
    (TR, 3) and is ignored.  The resident (HW, 3) pos matrix is subtracted
    from the budget.  Floor is 8 rows (one sublane), NOT 128, so the budget
    cannot be silently violated for large HW.
    """
    per_row = 2 * in_itemsize * hw + 2 * 4 * hw
    budget = max(vmem_budget_bytes - 3 * 4 * hw, per_row * 8)
    cap = min(max(budget // per_row, 8), max_block_rows)

    if num_tc <= 1:
        # Single-TensorCore chips (v5e / v6e): fewest, biggest blocks — each
        # extra grid step costs ~0.35 us and buys nothing.
        if rows <= cap:
            return rows                               # one block == full extent
        quantum = 128 if cap >= 128 else 8
        return max((cap // quantum) * quantum, 8)

    # v7x: split the (parallel) row axis evenly across the 2 TensorCores so
    # neither core idles on a ragged tail; step count is a multiple of num_tc.
    if rows <= 2 * 8:
        return rows                                   # too small to split
    steps = num_tc * max(1, pl.cdiv(rows, num_tc * cap))
    br = pl.cdiv(rows, steps)
    quantum = 128 if br >= 128 else 8
    br = pl.cdiv(br, quantum) * quantum
    if br > cap:                                      # never exceed the budget
        br = max((cap // quantum) * quantum, 8)
    return min(br, rows)


def spatial_softmax(feature, pos_x, pos_y, temperature, channels,
                    block_rows=None):
    """feature: (N, C, H, W)  ->  (N, channels, 2)"""
    N, C, H, W = feature.shape
    HW = H * W
    rows = N * C

    x = feature.reshape(rows, HW)                     # no padding / extra HBM copy
    # Single (HW, 3) aux operand: columns [1, pos_x, pos_y] feed one MXU dot.
    pos_mat = jnp.stack([jnp.ones_like(pos_x), pos_x, pos_y],
                        axis=1).astype(jnp.float32)   # (HW, 3)

    vmem_bytes, num_tc = _tpu_generation_info()
    # Working-set budget ~55% of physical VMEM, capped at 64 MiB:
    #   v5e/v6e (128 MiB physical) -> 64 MiB;  v7x (64 MiB) -> ~35 MiB.
    budget = min(int(vmem_bytes * 0.55), 64 * 1024 * 1024)
    vmem_limit = int(min(budget + 16 * 1024 * 1024,
                         vmem_bytes - 4 * 1024 * 1024))

    if block_rows is None:
        block_rows = _pick_block_rows(rows, HW, feature.dtype.itemsize,
                                      budget, num_tc)
    grid = (pl.cdiv(rows, block_rows),)               # ragged last block: OOB rows
                                                      # are masked, never written back

    out = pl.pallas_call(
        _spatial_softmax_kernel,
        out_shape=jax.ShapeDtypeStruct((rows, 2), feature.dtype),
        grid=grid,
        in_specs=[
            pl.BlockSpec(memory_space=pltpu.SMEM),               # temperature (1,)
            pl.BlockSpec((block_rows, HW), lambda i: (i, 0)),    # feature row-tile
            pl.BlockSpec((HW, 3), lambda i: (0, 0)),             # pos matrix, resident
        ],
        out_specs=pl.BlockSpec((block_rows, 2), lambda i: (i, 0)),
        compiler_params=pltpu.CompilerParams(
            dimension_semantics=("parallel",),        # shards rows across v7x TCs;
            vmem_limit_bytes=vmem_limit),             # measured-neutral on 1-TC chips
    )(temperature, x, pos_mat)

    return out.reshape(-1, channels, 2)


def _reference(feature, pos_x, pos_y, temp, channels):
    """Pure-JAX reference with the same semantics as the PyTorch forward."""
    H, W = feature.shape[-2], feature.shape[-1]
    x2d = feature.reshape(-1, H * W)
    wgt = jax.nn.softmax(x2d / temp[0], axis=-1)
    ref_x = jnp.sum(pos_x[None, :] * wgt, axis=-1, keepdims=True)
    ref_y = jnp.sum(pos_y[None, :] * wgt, axis=-1, keepdims=True)
    return jnp.concatenate([ref_x, ref_y], axis=-1).reshape(-1, channels, 2)


if __name__ == "__main__":
    # Small shapes consistent with the module: N=2, C=4, H=16, W=16
    N, C, H, W = 2, 4, 16, 16
    key = jax.random.PRNGKey(0)
    feature = jax.random.normal(key, (N, C, H, W), dtype=jnp.float32)

    # Deterministic params (exercise the temperature parameter path)
    pos_x, pos_y, temp = make_spatial_softmax_params(H, W, temperature=0.5)

    out = spatial_softmax(feature, pos_x, pos_y, temp, channels=C)
    out = jax.block_until_ready(out)
    ref = _reference(feature, pos_x, pos_y, temp, C)

    assert out.shape == (N, C, 2), out.shape
    np.testing.assert_allclose(np.asarray(out), np.asarray(ref),
                               rtol=5e-5, atol=5e-5)

    # Ragged-last-block test (rows % block_rows != 0) to lock in the
    # masked-writeback behaviour: rows = 24, block_rows = 16.
    C2 = 12
    feature2 = jax.random.normal(jax.random.PRNGKey(1), (N, C2, H, W),
                                 dtype=jnp.float32)
    out2 = jax.block_until_ready(
        spatial_softmax(feature2, pos_x, pos_y, temp, channels=C2,
                        block_rows=16))
    ref2 = _reference(feature2, pos_x, pos_y, temp, C2)
    np.testing.assert_allclose(np.asarray(out2), np.asarray(ref2),
                               rtol=5e-5, atol=5e-5)

    print("KERNEL_OK")
</pallas_src>

<mosaic_0001>
module attributes {stable_mosaic.version = 11 : i64} {
  func.func @_spatial_softmax_kernel(%arg0: i32, %arg1: memref<1xf32, #tpu.memory_space<smem>>, %arg2: memref<8x256xf32, #tpu.memory_space<vmem>>, %arg3: memref<256x3xf32, #tpu.memory_space<vmem>>, %arg4: memref<8x2xf32, #tpu.memory_space<vmem>>) attributes {dimension_semantics = [#tpu.dimension_semantics<parallel>], iteration_bounds = array<i64: 1>, scalar_prefetch = 0 : i64, scratch_operands = 0 : i64, tpu.core_type = #tpu.core_type<tc>, window_params = [{transform_indices = @transform_0, window_bounds = array<i64: 1>}, {transform_indices = @transform_1, window_bounds = array<i64: 8, 256>}, {pipeline_mode = #tpu.pipeline_mode<synchronous>, transform_indices = @transform_2, window_bounds = array<i64: 256, 3>}, {transform_indices = @transform_3, window_bounds = array<i64: 8, 2>}]} {
    %c0 = arith.constant 0 : index
    %0 = memref.load %arg1[%c0] : memref<1xf32, #tpu.memory_space<smem>>
    %cst = arith.constant 1.000000e+00 : f32
    %1 = arith.divf %cst, %0 : f32
    %c0_0 = arith.constant 0 : index
    %c0_1 = arith.constant 0 : index
    %2 = vector.load %arg2[%c0_0, %c0_1] : memref<8x256xf32, #tpu.memory_space<vmem>>, vector<8x256xf32>
    %3 = vector.broadcast %1 : f32 to vector<8x256xf32>
    %4 = arith.mulf %2, %3 : vector<8x256xf32>
    %cst_2 = arith.constant dense<0xFF800000> : vector<8xf32>
    %5 = vector.multi_reduction <maximumf>, %4, %cst_2 [1] : vector<8x256xf32> to vector<8xf32>
    %6 = vector.shape_cast %5 : vector<8xf32> to vector<8x1xf32>
    %7 = vector.broadcast %6 : vector<8x1xf32> to vector<8x256xf32>
    %8 = arith.subf %4, %7 : vector<8x256xf32>
    %9 = math.exp %8 : vector<8x256xf32>
    %c0_3 = arith.constant 0 : index
    %c0_4 = arith.constant 0 : index
    %10 = vector.load %arg3[%c0_3, %c0_4] : memref<256x3xf32, #tpu.memory_space<vmem>>, vector<256x3xf32>
    %cst_5 = arith.constant dense<0.000000e+00> : vector<8x3xf32>
    %11 = tpu.matmul %9, %10, %cst_5 {dimension_numbers = #tpu.dot_dimension_numbers<[1], [0], [0], [1], [0, 0, 1, 1], [], []>} : vector<8x256xf32>, vector<256x3xf32>, vector<8x3xf32> -> vector<8x3xf32>
    %12 = vector.extract_strided_slice %11 {offsets = [0, 0], sizes = [8, 1], strides = [1, 1]} : vector<8x3xf32> to vector<8x1xf32>
    %cst_6 = arith.constant 1.000000e+00 : f32
    %13 = vector.broadcast %cst_6 : f32 to vector<8x1xf32>
    %14 = arith.divf %13, %12 : vector<8x1xf32>
    %15 = vector.extract_strided_slice %11 {offsets = [0, 1], sizes = [8, 2], strides = [1, 1]} : vector<8x3xf32> to vector<8x2xf32>
    %16 = vector.broadcast %14 : vector<8x1xf32> to vector<8x2xf32>
    %17 = arith.mulf %15, %16 : vector<8x2xf32>
    %c0_7 = arith.constant 0 : index
    %c0_8 = arith.constant 0 : index
    %18 = vector.load %arg4[%c0_7, %c0_8] : memref<8x2xf32, #tpu.memory_space<vmem>>, vector<8x2xf32>
    tpu.vector_store %arg4[%c0_7, %c0_8], %17 {strides = array<i32>} : memref<8x2xf32, #tpu.memory_space<vmem>>, vector<8x2xf32>,
    return
  }
  func.func @transform_0(%arg0: i32) -> i32 {
    %c0_i32 = arith.constant 0 : i32
    %c0_i32_0 = arith.constant 0 : i32
    return %c0_i32 : i32
  }
  func.func @transform_1(%arg0: i32) -> (i32, i32) {
    %c0_i32 = arith.constant 0 : i32
    %c0_i32_0 = arith.constant 0 : i32
    return %arg0, %c0_i32 : i32, i32
  }
  func.func @transform_2(%arg0: i32) -> (i32, i32) {
    %c0_i32 = arith.constant 0 : i32
    %c0_i32_0 = arith.constant 0 : i32
    %c0_i32_1 = arith.constant 0 : i32
    return %c0_i32, %c0_i32_0 : i32, i32
  }
  func.func @transform_3(%arg0: i32) -> (i32, i32) {
    %c0_i32 = arith.constant 0 : i32
    %c0_i32_0 = arith.constant 0 : i32
    return %arg0, %c0_i32 : i32, i32
  }
}

</mosaic_0001>

<llo_original>
// kernel: tpu_custom_call.1
$region0: #{tpu_custom_call.1}
  #allocation0 [shape = 'u32[]', space=smem, size = 0x4, offset = 0x4, fixed_abs, tag = 'smem constant byte address 0x4 - core index']
  #allocation1 [shape = 'u32[144,128]{1,0:T(1,128)}', space=vmem, size = 0x12000, scoped, tag = 'internal scratch']
  #allocation2 [shape = 'f32[1]{0:T(128)S(6)}', space=smem, size = 0x200, scoped, tag = 'scoped memory for tpu_custom_call.1']
  %s0 = inlined_call_operand.<no memory space> [shape: f32[1], index: 0, kind: input, shape index: {}]
  %s1 = inlined_call_operand.vmem [shape: f32[8,256], index: 1, kind: input, shape index: {}]
  %s2 = inlined_call_operand.vmem [shape: f32[256,3], index: 2, kind: input, shape index: {}]
  %s3 = inlined_call_operand.vmem [shape: f32[8,2], index: 3, kind: output, shape index: {}]
  %s4 = sld [smem:[#allocation0]]
  $region22: #{tpu_custom_call.1} parent=0
    _
  %s6 = ssub.s32 1, %s4
  %s7 = scalar_select 0, %s6, %s4
  %8 = sst [smem:[#allocation2]] %s0
  // Predicated region
  $region2: #{tpu_custom_call.1} parent=0 // pred_check
    _
  $region3: #{tpu_custom_call.1} parent=0 // pred_check_branch
    %10 = sbr.rel (0) target = $region5
  $region4: #{tpu_custom_call.1} parent=0 // pred_region
    _
  $region5: #{tpu_custom_call.1} parent=0 // pred_fallthru
    _
  // Predicated region
  $region6: #{tpu_custom_call.1} parent=0 // pred_check
    _
  $region7: #{tpu_custom_call.1} parent=0 // pred_check_branch
    %12 = sbr.rel (0) target = $region9
  $region8: #{tpu_custom_call.1} parent=0 // pred_region
    _
  $region9: #{tpu_custom_call.1} parent=0 // pred_fallthru
    _
  // Predicated region
  $region10: #{tpu_custom_call.1} parent=0 // pred_check
    _
  $region11: #{tpu_custom_call.1} parent=0 // pred_check_branch
    %14 = sbr.rel (0) target = $region13
  $region12: #{tpu_custom_call.1} parent=0 // pred_region
    _
  $region13: #{tpu_custom_call.1} parent=0 // pred_fallthru
    _
  %s15 = sld [smem:[#allocation2]]
  %v16 = vstv %s15
  %v17 = vrcp.pop %v16
  %s18 = vtos %v17
  %v19 = vld [vmem:[%s1] sm:$0xff]
  %v20 = vld [vmem:[%s1 + $0x8] sm:$0xff]
  %v21 = vstv %s18
  %v22 = vmul.f32 %v19, %v21
  %v23 = vmul.f32 %v20, %v21
  %v24 = vmax.f32 %v22, %v23
  %25 = vmax.xlane.f32.xlu0 %v24
  %v26 = vpop.xlane.xlu0 %25
  %v27 = vsub.f32 %v22, %v26
  %v28 = vsub.f32 %v23, %v26
  %v29 = vmul.f32 %v27, 1.442695
  %v30 = vpow.pop %v29
  %v31 = vmul.f32 %v28, 1.442695
  %v32 = vpow.pop %v31
  %v33 = vld [vmem:[%s2] sm:$0xff]
  %v34 = vld [vmem:[%s2 + $0x8] sm:$0xff]
  %v35 = vld [vmem:[%s2 + $0x10] sm:$0xff]
  %v36 = vld [vmem:[%s2 + $0x18] sm:$0xff]
  %v37 = vld [vmem:[%s2 + $0x20] sm:$0xff]
  %v38 = vld [vmem:[%s2 + $0x28] sm:$0xff]
  %v39 = vld [vmem:[%s2 + $0x30] sm:$0xff]
  %v40 = vld [vmem:[%s2 + $0x38] sm:$0xff]
  %v41 = vld [vmem:[%s2 + $0x40] sm:$0xff]
  %v42 = vld [vmem:[%s2 + $0x48] sm:$0xff]
  %v43 = vld [vmem:[%s2 + $0x50] sm:$0xff]
  %v44 = vld [vmem:[%s2 + $0x58] sm:$0xff]
  %v45 = vld [vmem:[%s2 + $0x60] sm:$0xff]
  %v46 = vld [vmem:[%s2 + $0x68] sm:$0xff]
  %v47 = vld [vmem:[%s2 + $0x70] sm:$0xff]
  %v48 = vld [vmem:[%s2 + $0x78] sm:$0xff]
  %v49 = vld [vmem:[%s2 + $0x80] sm:$0xff]
  %v50 = vld [vmem:[%s2 + $0x88] sm:$0xff]
  %v51 = vld [vmem:[%s2 + $0x90] sm:$0xff]
  %v52 = vld [vmem:[%s2 + $0x98] sm:$0xff]
  %v53 = vld [vmem:[%s2 + $0xa0] sm:$0xff]
  %v54 = vld [vmem:[%s2 + $0xa8] sm:$0xff]
  %v55 = vld [vmem:[%s2 + $0xb0] sm:$0xff]
  %v56 = vld [vmem:[%s2 + $0xb8] sm:$0xff]
  %v57 = vld [vmem:[%s2 + $0xc0] sm:$0xff]
  %v58 = vld [vmem:[%s2 + $0xc8] sm:$0xff]
  %v59 = vld [vmem:[%s2 + $0xd0] sm:$0xff]
  %v60 = vld [vmem:[%s2 + $0xd8] sm:$0xff]
  %v61 = vld [vmem:[%s2 + $0xe0] sm:$0xff]
  %v62 = vld [vmem:[%s2 + $0xe8] sm:$0xff]
  %v63 = vld [vmem:[%s2 + $0xf0] sm:$0xff]
  %v64 = vld [vmem:[%s2 + $0xf8] sm:$0xff]
  %65 = vmatprep.subr.mxu0 0.0
  %66 = vmatpush1.msra.mxu0 %v33
  %67 = vmatprep.subr.mxu0 0.0
  %68 = vmatpush1.msra.mxu0 %v34
  %69 = vmatprep.subr.mxu0 0.0
  %70 = vmatpush1.msra.mxu0 %v35
  %71 = vmatprep.subr.mxu0 0.0
  %72 = vmatpush1.msra.mxu0 %v36
  %73 = vmatprep.subr.mxu0 0.0
  %74 = vmatpush1.msra.mxu0 %v37
  %75 = vmatprep.subr.mxu0 0.0
  %76 = vmatpush1.msra.mxu0 %v38
  %77 = vmatprep.subr.mxu0 0.0
  %78 = vmatpush1.msra.mxu0 %v39
  %79 = vmatprep.subr.mxu0 0.0
  %80 = vmatpush1.msra.mxu0 %v40
  %81 = vmatprep.subr.mxu0 0.0
  %82 = vmatpush1.msra.mxu0 %v41
  %83 = vmatprep.subr.mxu0 0.0
  %84 = vmatpush1.msra.mxu0 %v42
  %85 = vmatprep.subr.mxu0 0.0
  %86 = vmatpush1.msra.mxu0 %v43
  %87 = vmatprep.subr.mxu0 0.0
  %88 = vmatpush1.msra.mxu0 %v44
  %89 = vmatprep.subr.mxu0 0.0
  %90 = vmatpush1.msra.mxu0 %v45
  %91 = vmatprep.subr.mxu0 0.0
  %92 = vmatpush1.msra.mxu0 %v46
  %93 = vmatprep.subr.mxu0 0.0
  %94 = vmatpush1.msra.mxu0 %v47
  %95 = vmatprep.subr.mxu0 0.0
  %96 = vmatpush1.msra.mxu0 %v48
  %97 = vmatprep.subr.mxu0 0.0
  %98 = vmatpush1.msra.mxu0 %v49
  %99 = vmatprep.subr.mxu0 0.0
  %100 = vmatpush1.msra.mxu0 %v50
  %101 = vmatprep.subr.mxu0 0.0
  %102 = vmatpush1.msra.mxu0 %v51
  %103 = vmatprep.subr.mxu0 0.0
  %104 = vmatpush1.msra.mxu0 %v52
  %105 = vmatprep.subr.mxu0 0.0
  %106 = vmatpush1.msra.mxu0 %v53
  %107 = vmatprep.subr.mxu0 0.0
  %108 = vmatpush1.msra.mxu0 %v54
  %109 = vmatprep.subr.mxu0 0.0
  %110 = vmatpush1.msra.mxu0 %v55
  %111 = vmatprep.subr.mxu0 0.0
  %112 = vmatpush1.msra.mxu0 %v56
  %113 = vmatprep.subr.mxu0 0.0
  %114 = vmatpush1.msra.mxu0 %v57
  %115 = vmatprep.subr.mxu0 0.0
  %116 = vmatpush1.msra.mxu0 %v58
  %117 = vmatprep.subr.mxu0 0.0
  %118 = vmatpush1.msra.mxu0 %v59
  %119 = vmatprep.subr.mxu0 0.0
  %120 = vmatpush1.msra.mxu0 %v60
  %121 = vmatprep.subr.mxu0 0.0
  %122 = vmatpush1.msra.mxu0 %v61
  %123 = vmatprep.subr.mxu0 0.0
  %124 = vmatpush1.msra.mxu0 %v62
  %125 = vmatprep.subr.mxu0 0.0
  %126 = vmatpush1.msra.mxu0 %v63
  %127 = vmatprep.subr.mxu0 0.0
  %128 = vmatpush1.msra.mxu0 %v64
  %129 = vmatprep.mubr.f32.mxu0 %v32
  %130 = vmatmul.mubr.f32.gmra.mrb[0].mxu0 %v30
  %v131 = vpop.f32.mrb[0].mxu0
  %v132 = vadd.f32 0.0, %v131
  %v133 = vpop.f32.mrb[0].mxu0
  %134 = vdwg.mxu0
  %v135 = vrcp.pop %v132
  %v136 = vmul.f32 1.0, %v135
  %138 = vset.pattern.permute.xlu0 0
  %139 = vperm.xlu0 %138, %v136
  %v140 = vpop.permute.xlu0 %139
  %v142 = vmul.f32 %v132, %v140
  %144 = vrot.lane.b32.xlu0 %v142, 127
  %v145 = vpop.permute.xlu0 %144
  %vm147 = vcmask 15360
  %148 = vst.msk [vmem:[%s3] sm:$0xff] %vm147, %v145
  // Predicated region
  $region14: #{tpu_custom_call.1} parent=0 // pred_check
    _
  $region15: #{tpu_custom_call.1} parent=0 // pred_check_branch
    %150 = sbr.rel (0) target = $region17
  $region16: #{tpu_custom_call.1} parent=0 // pred_region
    _
  $region17: #{tpu_custom_call.1} parent=0 // pred_fallthru
    _
  // Predicated region
  $region18: #{tpu_custom_call.1} parent=0 // pred_check
    _
  $region19: #{tpu_custom_call.1} parent=0 // pred_check_branch
    %152 = sbr.rel (0) target = $region21
  $region20: #{tpu_custom_call.1} parent=0 // pred_region
    _
  $region21: #{tpu_custom_call.1} parent=0 // pred_fallthru
    _

</llo_original>
